<compile_context>
chip_gen: v7x
topology: tpu7x:2x2x1
jax: 0.10.0
libtpu: 0.0.40
codegen_flags: <defaults>
</compile_context>

<pallas_src>
import jax
import jax.numpy as jnp
from jax.experimental import pallas as pl
from jax.experimental.pallas import tpu as pltpu

NUM_LAYERS = 3        # conv1 + (NUM_LAYERS - 1) convs, as in the PyTorch module
LANE = 128            # lane-dense padding target for hidden / class dims
NEG_INF = -1e30       # bias for padded class columns (ignored by log_softmax)


def gcn_kernel(x_ref, a_ref, w1_ref, b1_ref, wl_ref, bl_ref, w2_ref, b2_ref,
               out_ref):
    f32 = jnp.float32
    bf16 = jnp.bfloat16

    a = a_ref[0]                                   # (n, n)  bf16, normalized adjacency
    xg = x_ref[0]                                  # (n, F)  bf16

    # conv1: aggregate first (F << H), then project.  A_hat @ (x W) == (A_hat @ x) W.
    z = jnp.dot(a, xg, preferred_element_type=f32)                       # (n, F)
    z = jnp.dot(z.astype(bf16), w1_ref[...], preferred_element_type=f32)
    h = jnp.maximum(z + b1_ref[...], 0.0)                                # (n, H) f32

    # convs[0 .. NUM_LAYERS-2]
    for l in range(NUM_LAYERS - 1):
        w_l = wl_ref[l]                            # (H, H) bf16
        b_l = bl_ref[l]                            # (1, H) f32
        z = jnp.dot(a, h.astype(bf16), preferred_element_type=f32)       # aggregate
        z = jnp.dot(z.astype(bf16), w_l, preferred_element_type=f32)     # project
        h = jnp.maximum(z + b_l, 0.0)

    # global_mean_pool: one grid step == one (equal-sized) graph.
    pooled = jnp.mean(h, axis=0, keepdims=True)                          # (1, H)

    # TODO(synk): F.dropout(p=0.5) is identity in eval mode; training-mode dropout not implemented.

    logits = jnp.dot(pooled.astype(bf16), w2_ref[...],
                     preferred_element_type=f32) + b2_ref[...]           # (1, Cp)

    # log_softmax over classes; padded class columns carry bias -1e30 -> exp ~ 0.
    m = jnp.max(logits, axis=-1, keepdims=True)
    s = logits - m
    lse = jnp.log(jnp.sum(jnp.exp(s), axis=-1, keepdims=True))
    out_ref[0] = (s - lse).astype(out_ref.dtype)


def gcn_forward(x, a_hat, params, num_classes):
    """x: (G, n, F) bf16; a_hat: (G, n, n) bf16; returns (G, num_classes) f32."""
    G, n, F = x.shape
    Cp = params["w2"].shape[1]

    const2 = lambda g: (0, 0)
    const3 = lambda g: (0, 0, 0)
    in_specs = [
        pl.BlockSpec((1, n, F), lambda g: (g, 0, 0)),   # x: one graph per step
        pl.BlockSpec((1, n, n), lambda g: (g, 0, 0)),   # A_hat: one graph per step
        pl.BlockSpec(params["w1"].shape, const2),       # weights: resident, fetched once
        pl.BlockSpec(params["b1"].shape, const2),
        pl.BlockSpec(params["wl"].shape, const3),
        pl.BlockSpec(params["bl"].shape, const3),
        pl.BlockSpec(params["w2"].shape, const2),
        pl.BlockSpec(params["b2"].shape, const2),
    ]
    out = pl.pallas_call(
        gcn_kernel,
        grid=(G,),
        in_specs=in_specs,
        out_specs=pl.BlockSpec((1, 1, Cp), lambda g: (g, 0, 0)),
        out_shape=jax.ShapeDtypeStruct((G, 1, Cp), jnp.float32),
        compiler_params=pltpu.CompilerParams(
            dimension_semantics=("parallel",),          # graphs are independent
            vmem_limit_bytes=32 * 1024 * 1024,          # actual footprint << 1 MiB
        ),
    )(x, a_hat, params["w1"], params["b1"], params["wl"], params["bl"],
      params["w2"], params["b2"])
    return out[:, 0, :num_classes]


def init_params(key, num_features, num_hidden, num_classes, num_layers):
    # TODO(synk): torch.manual_seed(12345)-exact init not reproduced; shapes/semantics match.
    ks = jax.random.split(key, 2 * (num_layers + 1))
    scale = 0.1
    w1 = scale * jax.random.normal(ks[0], (num_features, num_hidden), jnp.float32)
    b1 = scale * jax.random.normal(ks[1], (1, num_hidden), jnp.float32)
    wl = jnp.stack([scale * jax.random.normal(ks[2 + 2 * l], (num_hidden, num_hidden), jnp.float32)
                    for l in range(num_layers - 1)])
    bl = jnp.stack([scale * jax.random.normal(ks[3 + 2 * l], (1, num_hidden), jnp.float32)
                    for l in range(num_layers - 1)])
    w2 = scale * jax.random.normal(ks[-2], (num_hidden, num_classes), jnp.float32)
    b2 = scale * jax.random.normal(ks[-1], (1, num_classes), jnp.float32)
    return dict(w1=w1, b1=b1, wl=wl, bl=bl, w2=w2, b2=b2)


def pad_params_lane_dense(params, hidden_pad=LANE, class_pad=LANE):
    """Zero-pad hidden/class dims to lane width; padded classes get -1e30 bias.

    Weights (pure matmul operands) are cast to bf16; biases stay f32."""
    H = params["w1"].shape[1]
    C = params["w2"].shape[1]
    dh = hidden_pad - H
    dc = class_pad - C
    w1 = jnp.pad(params["w1"], ((0, 0), (0, dh)))
    b1 = jnp.pad(params["b1"], ((0, 0), (0, dh)))
    wl = jnp.pad(params["wl"], ((0, 0), (0, dh), (0, dh)))
    bl = jnp.pad(params["bl"], ((0, 0), (0, 0), (0, dh)))
    w2 = jnp.pad(params["w2"], ((0, dh), (0, dc)))
    b2 = jnp.pad(params["b2"], ((0, 0), (0, dc)), constant_values=NEG_INF)
    return dict(
        w1=w1.astype(jnp.bfloat16), b1=b1,
        wl=wl.astype(jnp.bfloat16), bl=bl,
        w2=w2.astype(jnp.bfloat16), b2=b2,
    )


def build_batched_graph(num_graphs, nodes_per_graph):
    """Deterministic ring per sub-graph; returns (G, n, n) GCN-normalized adjacency.

    A_hat = D^-1/2 (A + I) D^-1/2 with unit edge weights (matches GCNConv with
    add_self_loops=True, normalize=True, edge_weight=None)."""
    n = nodes_per_graph
    idx = jnp.arange(n)
    nxt = (idx + 1) % n
    a = jnp.zeros((n, n), jnp.float32)
    a = a.at[nxt, idx].add(1.0)
    a = a.at[idx, nxt].add(1.0)
    a_tilde = a + jnp.eye(n, dtype=jnp.float32)
    d_inv_sqrt = jax.lax.rsqrt(a_tilde.sum(axis=1))
    a_hat = a_tilde * d_inv_sqrt[:, None] * d_inv_sqrt[None, :]
    return jnp.broadcast_to(a_hat, (num_graphs, n, n)).astype(jnp.bfloat16)


if __name__ == "__main__":
    num_features, num_hidden, num_classes = 4, 32, 3
    num_graphs, nodes_per_graph = 4, 16

    key = jax.random.PRNGKey(0)
    k_x, k_p = jax.random.split(key)

    # Node features laid out per graph (all graphs equal-sized here).
    x = jax.random.normal(
        k_x, (num_graphs, nodes_per_graph, num_features), jnp.float32)
    a_hat = build_batched_graph(num_graphs, nodes_per_graph)

    params = init_params(k_p, num_features, num_hidden, num_classes, NUM_LAYERS)
    params = pad_params_lane_dense(params)

    out = gcn_forward(x.astype(jnp.bfloat16), a_hat, params, num_classes)
    out = jax.block_until_ready(out)

    assert out.shape == (num_graphs, num_classes)
    assert bool(jnp.all(jnp.isfinite(out)))
    # log_softmax rows must be valid log-probabilities
    assert bool(jnp.allclose(jnp.exp(out).sum(axis=-1), 1.0, atol=1e-3))
    print("KERNEL_OK")
</pallas_src>

<mosaic_0001>
module attributes {stable_mosaic.version = 11 : i64} {
  func.func @gcn_kernel(%arg0: i32, %arg1: memref<1x16x4xbf16, #tpu.memory_space<vmem>>, %arg2: memref<1x16x16xbf16, #tpu.memory_space<vmem>>, %arg3: memref<4x128xbf16, #tpu.memory_space<vmem>>, %arg4: memref<1x128xf32, #tpu.memory_space<vmem>>, %arg5: memref<2x128x128xbf16, #tpu.memory_space<vmem>>, %arg6: memref<2x1x128xf32, #tpu.memory_space<vmem>>, %arg7: memref<128x128xbf16, #tpu.memory_space<vmem>>, %arg8: memref<1x128xf32, #tpu.memory_space<vmem>>, %arg9: memref<1x1x128xf32, #tpu.memory_space<vmem>>) attributes {dimension_semantics = [#tpu.dimension_semantics<parallel>], iteration_bounds = array<i64: 4>, scalar_prefetch = 0 : i64, scratch_operands = 0 : i64, tpu.core_type = #tpu.core_type<tc>, window_params = [{transform_indices = @transform_0, window_bounds = array<i64: 1, 16, 4>}, {transform_indices = @transform_1, window_bounds = array<i64: 1, 16, 16>}, {pipeline_mode = #tpu.pipeline_mode<synchronous>, transform_indices = @transform_2, window_bounds = array<i64: 4, 128>}, {pipeline_mode = #tpu.pipeline_mode<synchronous>, transform_indices = @transform_3, window_bounds = array<i64: 1, 128>}, {pipeline_mode = #tpu.pipeline_mode<synchronous>, transform_indices = @transform_4, window_bounds = array<i64: 2, 128, 128>}, {pipeline_mode = #tpu.pipeline_mode<synchronous>, transform_indices = @transform_5, window_bounds = array<i64: 2, 1, 128>}, {pipeline_mode = #tpu.pipeline_mode<synchronous>, transform_indices = @transform_6, window_bounds = array<i64: 128, 128>}, {pipeline_mode = #tpu.pipeline_mode<synchronous>, transform_indices = @transform_7, window_bounds = array<i64: 1, 128>}, {transform_indices = @transform_8, window_bounds = array<i64: 1, 1, 128>}]} {
    %c0 = arith.constant 0 : index
    %c0_0 = arith.constant 0 : index
    %c0_1 = arith.constant 0 : index
    %0 = vector.load %arg2[%c0, %c0_0, %c0_1] : memref<1x16x16xbf16, #tpu.memory_space<vmem>>, vector<1x16x16xbf16>
    %1 = vector.shape_cast %0 : vector<1x16x16xbf16> to vector<16x16xbf16>
    %c0_2 = arith.constant 0 : index
    %c0_3 = arith.constant 0 : index
    %c0_4 = arith.constant 0 : index
    %2 = vector.load %arg1[%c0_2, %c0_3, %c0_4] : memref<1x16x4xbf16, #tpu.memory_space<vmem>>, vector<1x16x4xbf16>
    %3 = vector.shape_cast %2 : vector<1x16x4xbf16> to vector<16x4xbf16>
    %cst = arith.constant dense<0.000000e+00> : vector<16x4xf32>
    %4 = tpu.matmul %1, %3, %cst {dimension_numbers = #tpu.dot_dimension_numbers<[1], [0], [0], [1], [0, 0, 1, 1], [], []>} : vector<16x16xbf16>, vector<16x4xbf16>, vector<16x4xf32> -> vector<16x4xf32>
    %5 = arith.truncf %4 : vector<16x4xf32> to vector<16x4xbf16>
    %c0_5 = arith.constant 0 : index
    %c0_6 = arith.constant 0 : index
    %6 = vector.load %arg3[%c0_5, %c0_6] : memref<4x128xbf16, #tpu.memory_space<vmem>>, vector<4x128xbf16>
    %cst_7 = arith.constant dense<0.000000e+00> : vector<16x128xf32>
    %7 = tpu.matmul %5, %6, %cst_7 {dimension_numbers = #tpu.dot_dimension_numbers<[1], [0], [0], [1], [0, 0, 1, 1], [], []>} : vector<16x4xbf16>, vector<4x128xbf16>, vector<16x128xf32> -> vector<16x128xf32>
    %c0_8 = arith.constant 0 : index
    %c0_9 = arith.constant 0 : index
    %8 = vector.load %arg4[%c0_8, %c0_9] : memref<1x128xf32, #tpu.memory_space<vmem>>, vector<1x128xf32>
    %9 = vector.broadcast %8 : vector<1x128xf32> to vector<16x128xf32>
    %10 = arith.addf %7, %9 : vector<16x128xf32>
    %cst_10 = arith.constant 0.000000e+00 : f32
    %11 = vector.broadcast %cst_10 : f32 to vector<16x128xf32>
    %12 = arith.maximumf %10, %11 : vector<16x128xf32>
    %c0_11 = arith.constant 0 : index
    %c0_12 = arith.constant 0 : index
    %c0_13 = arith.constant 0 : index
    %13 = vector.load %arg5[%c0_11, %c0_12, %c0_13] : memref<2x128x128xbf16, #tpu.memory_space<vmem>>, vector<1x128x128xbf16>
    %14 = vector.shape_cast %13 : vector<1x128x128xbf16> to vector<128x128xbf16>
    %c0_14 = arith.constant 0 : index
    %c0_15 = arith.constant 0 : index
    %c0_16 = arith.constant 0 : index
    %15 = vector.load %arg6[%c0_14, %c0_15, %c0_16] : memref<2x1x128xf32, #tpu.memory_space<vmem>>, vector<1x1x128xf32>
    %16 = vector.shape_cast %15 : vector<1x1x128xf32> to vector<1x128xf32>
    %17 = arith.truncf %12 : vector<16x128xf32> to vector<16x128xbf16>
    %cst_17 = arith.constant dense<0.000000e+00> : vector<16x128xf32>
    %18 = tpu.matmul %1, %17, %cst_17 {dimension_numbers = #tpu.dot_dimension_numbers<[1], [0], [0], [1], [0, 0, 1, 1], [], []>} : vector<16x16xbf16>, vector<16x128xbf16>, vector<16x128xf32> -> vector<16x128xf32>
    %19 = arith.truncf %18 : vector<16x128xf32> to vector<16x128xbf16>
    %cst_18 = arith.constant dense<0.000000e+00> : vector<16x128xf32>
    %20 = tpu.matmul %19, %14, %cst_18 {dimension_numbers = #tpu.dot_dimension_numbers<[1], [0], [0], [1], [0, 0, 1, 1], [], []>} : vector<16x128xbf16>, vector<128x128xbf16>, vector<16x128xf32> -> vector<16x128xf32>
    %21 = vector.broadcast %16 : vector<1x128xf32> to vector<16x128xf32>
    %22 = arith.addf %20, %21 : vector<16x128xf32>
    %cst_19 = arith.constant 0.000000e+00 : f32
    %23 = vector.broadcast %cst_19 : f32 to vector<16x128xf32>
    %24 = arith.maximumf %22, %23 : vector<16x128xf32>
    %c1 = arith.constant 1 : index
    %c0_20 = arith.constant 0 : index
    %c0_21 = arith.constant 0 : index
    %25 = vector.load %arg5[%c1, %c0_20, %c0_21] : memref<2x128x128xbf16, #tpu.memory_space<vmem>>, vector<1x128x128xbf16>
    %26 = vector.shape_cast %25 : vector<1x128x128xbf16> to vector<128x128xbf16>
    %c1_22 = arith.constant 1 : index
    %c0_23 = arith.constant 0 : index
    %c0_24 = arith.constant 0 : index
    %27 = vector.load %arg6[%c1_22, %c0_23, %c0_24] : memref<2x1x128xf32, #tpu.memory_space<vmem>>, vector<1x1x128xf32>
    %28 = vector.shape_cast %27 : vector<1x1x128xf32> to vector<1x128xf32>
    %29 = arith.truncf %24 : vector<16x128xf32> to vector<16x128xbf16>
    %cst_25 = arith.constant dense<0.000000e+00> : vector<16x128xf32>
    %30 = tpu.matmul %1, %29, %cst_25 {dimension_numbers = #tpu.dot_dimension_numbers<[1], [0], [0], [1], [0, 0, 1, 1], [], []>} : vector<16x16xbf16>, vector<16x128xbf16>, vector<16x128xf32> -> vector<16x128xf32>
    %31 = arith.truncf %30 : vector<16x128xf32> to vector<16x128xbf16>
    %cst_26 = arith.constant dense<0.000000e+00> : vector<16x128xf32>
    %32 = tpu.matmul %31, %26, %cst_26 {dimension_numbers = #tpu.dot_dimension_numbers<[1], [0], [0], [1], [0, 0, 1, 1], [], []>} : vector<16x128xbf16>, vector<128x128xbf16>, vector<16x128xf32> -> vector<16x128xf32>
    %33 = vector.broadcast %28 : vector<1x128xf32> to vector<16x128xf32>
    %34 = arith.addf %32, %33 : vector<16x128xf32>
    %cst_27 = arith.constant 0.000000e+00 : f32
    %35 = vector.broadcast %cst_27 : f32 to vector<16x128xf32>
    %36 = arith.maximumf %34, %35 : vector<16x128xf32>
    %cst_28 = arith.constant dense<0.000000e+00> : vector<128xf32>
    %37 = vector.multi_reduction <add>, %36, %cst_28 [0] : vector<16x128xf32> to vector<128xf32>
    %38 = vector.shape_cast %37 : vector<128xf32> to vector<1x128xf32>
    %cst_29 = arith.constant 1.600000e+01 : f32
    %39 = vector.broadcast %cst_29 : f32 to vector<1x128xf32>
    %40 = arith.divf %38, %39 : vector<1x128xf32>
    %41 = arith.truncf %40 : vector<1x128xf32> to vector<1x128xbf16>
    %c0_30 = arith.constant 0 : index
    %c0_31 = arith.constant 0 : index
    %42 = vector.load %arg7[%c0_30, %c0_31] : memref<128x128xbf16, #tpu.memory_space<vmem>>, vector<128x128xbf16>
    %cst_32 = arith.constant dense<0.000000e+00> : vector<1x128xf32>
    %43 = tpu.matmul %41, %42, %cst_32 {dimension_numbers = #tpu.dot_dimension_numbers<[1], [0], [0], [1], [0, 0, 1, 1], [], []>} : vector<1x128xbf16>, vector<128x128xbf16>, vector<1x128xf32> -> vector<1x128xf32>
    %c0_33 = arith.constant 0 : index
    %c0_34 = arith.constant 0 : index
    %44 = vector.load %arg8[%c0_33, %c0_34] : memref<1x128xf32, #tpu.memory_space<vmem>>, vector<1x128xf32>
    %45 = arith.addf %43, %44 : vector<1x128xf32>
    %cst_35 = arith.constant dense<0xFF800000> : vector<1xf32>
    %46 = vector.multi_reduction <maximumf>, %45, %cst_35 [1] : vector<1x128xf32> to vector<1xf32>
    %47 = vector.shape_cast %46 : vector<1xf32> to vector<1x1xf32>
    %48 = vector.broadcast %47 : vector<1x1xf32> to vector<1x128xf32>
    %49 = arith.subf %45, %48 : vector<1x128xf32>
    %50 = math.exp %49 : vector<1x128xf32>
    %cst_36 = arith.constant dense<0.000000e+00> : vector<1xf32>
    %51 = vector.multi_reduction <add>, %50, %cst_36 [1] : vector<1x128xf32> to vector<1xf32>
    %52 = vector.shape_cast %51 : vector<1xf32> to vector<1x1xf32>
    %53 = math.log %52 : vector<1x1xf32>
    %54 = vector.broadcast %53 : vector<1x1xf32> to vector<1x128xf32>
    %55 = arith.subf %49, %54 : vector<1x128xf32>
    %c0_37 = arith.constant 0 : index
    %c0_38 = arith.constant 0 : index
    %c0_39 = arith.constant 0 : index
    %56 = vector.load %arg9[%c0_37, %c0_38, %c0_39] : memref<1x1x128xf32, #tpu.memory_space<vmem>>, vector<1x1x128xf32>
    %57 = vector.shape_cast %56 : vector<1x1x128xf32> to vector<1x128xf32>
    %58 = vector.shape_cast %55 : vector<1x128xf32> to vector<1x1x128xf32>
    tpu.vector_store %arg9[%c0_37, %c0_38, %c0_39], %58 {strides = array<i32>} : memref<1x1x128xf32, #tpu.memory_space<vmem>>, vector<1x1x128xf32>,
    return
  }
  func.func @transform_0(%arg0: i32) -> (i32, i32, i32) {
    %c0_i32 = arith.constant 0 : i32
    %c0_i32_0 = arith.constant 0 : i32
    %c0_i32_1 = arith.constant 0 : i32
    return %arg0, %c0_i32, %c0_i32_0 : i32, i32, i32
  }
  func.func @transform_1(%arg0: i32) -> (i32, i32, i32) {
    %c0_i32 = arith.constant 0 : i32
    %c0_i32_0 = arith.constant 0 : i32
    %c0_i32_1 = arith.constant 0 : i32
    return %arg0, %c0_i32, %c0_i32_0 : i32, i32, i32
  }
  func.func @transform_2(%arg0: i32) -> (i32, i32) {
    %c0_i32 = arith.constant 0 : i32
    %c0_i32_0 = arith.constant 0 : i32
    %c0_i32_1 = arith.constant 0 : i32
    return %c0_i32, %c0_i32_0 : i32, i32
  }
  func.func @transform_3(%arg0: i32) -> (i32, i32) {
    %c0_i32 = arith.constant 0 : i32
    %c0_i32_0 = arith.constant 0 : i32
    %c0_i32_1 = arith.constant 0 : i32
    return %c0_i32, %c0_i32_0 : i32, i32
  }
  func.func @transform_4(%arg0: i32) -> (i32, i32, i32) {
    %c0_i32 = arith.constant 0 : i32
    %c0_i32_0 = arith.constant 0 : i32
    %c0_i32_1 = arith.constant 0 : i32
    %c0_i32_2 = arith.constant 0 : i32
    return %c0_i32, %c0_i32_0, %c0_i32_1 : i32, i32, i32
  }
  func.func @transform_5(%arg0: i32) -> (i32, i32, i32) {
    %c0_i32 = arith.constant 0 : i32
    %c0_i32_0 = arith.constant 0 : i32
    %c0_i32_1 = arith.constant 0 : i32
    %c0_i32_2 = arith.constant 0 : i32
    return %c0_i32, %c0_i32_0, %c0_i32_1 : i32, i32, i32
  }
  func.func @transform_6(%arg0: i32) -> (i32, i32) {
    %c0_i32 = arith.constant 0 : i32
    %c0_i32_0 = arith.constant 0 : i32
    %c0_i32_1 = arith.constant 0 : i32
    return %c0_i32, %c0_i32_0 : i32, i32
  }
  func.func @transform_7(%arg0: i32) -> (i32, i32) {
    %c0_i32 = arith.constant 0 : i32
    %c0_i32_0 = arith.constant 0 : i32
    %c0_i32_1 = arith.constant 0 : i32
    return %c0_i32, %c0_i32_0 : i32, i32
  }
  func.func @transform_8(%arg0: i32) -> (i32, i32, i32) {
    %c0_i32 = arith.constant 0 : i32
    %c0_i32_0 = arith.constant 0 : i32
    %c0_i32_1 = arith.constant 0 : i32
    return %arg0, %c0_i32, %c0_i32_0 : i32, i32, i32
  }
}

</mosaic_0001>

<llo_original>
// kernel: tpu_custom_call.1
$region0: #{tpu_custom_call.1}
  #allocation0 [shape = 'u32[]', space=smem, size = 0x4, offset = 0x4, fixed_abs, tag = 'smem constant byte address 0x4 - core index']
  #allocation1 [shape = 'u32[144,128]{1,0:T(1,128)}', space=vmem, size = 0x12000, scoped, tag = 'internal scratch']
  %s0 = inlined_call_operand.vmem [shape: bf16[4,16,4], index: 0, kind: input, shape index: {}]
  %s1 = inlined_call_operand.vmem [shape: bf16[4,16,16], index: 1, kind: input, shape index: {}]
  %s2 = inlined_call_operand.vmem [shape: bf16[4,128], index: 2, kind: input, shape index: {}]
  %s3 = inlined_call_operand.vmem [shape: f32[1,128], index: 3, kind: input, shape index: {}]
  %s4 = inlined_call_operand.hbm [shape: bf16[2,128,128], index: 4, kind: input, shape index: {}]
  %s5 = inlined_call_operand.vmem [shape: f32[2,1,128], index: 5, kind: input, shape index: {}]
  %s6 = inlined_call_operand.hbm [shape: bf16[128,128], index: 6, kind: input, shape index: {}]
  %s7 = inlined_call_operand.vmem [shape: f32[1,128], index: 7, kind: input, shape index: {}]
  %s8 = inlined_call_operand.hbm [shape: f32[4,1,128], index: 8, kind: output, shape index: {}]
  %s9 = sld [smem:[#allocation0]]
  $region73: #{tpu_custom_call.1} parent=0
    _
  %s11 = ssub.s32 1, %s9
  %s12 = scalar_select 0, %s11, %s9
  $region1: #{tpu_custom_call.1} parent=0
    #allocation2 [shape = 'u8[65536]{0}', space=vmem, size = 0x10000, scoped, tag = 'input window, operand 4, single buffered']
    #allocation3 [shape = 's32[2]{0}', space=sflag, size = 0x8, scoped, tag = 'scoped memory for tpu_custom_call.1']
    #allocation4 [shape = 's32[2]{0}', space=sflag, size = 0x8, scoped, tag = 'scoped memory for tpu_custom_call.1']
    #allocation5 [shape = 'u8[32768]{0}', space=vmem, size = 0x8000, scoped, tag = 'input window, operand 6, single buffered']
    #allocation6 [shape = 's32[1]{0}', space=sflag, size = 0x4, scoped, tag = 'scoped memory for tpu_custom_call.1']
    #allocation7 [shape = 'u8[1024]{0}', space=vmem, size = 0x400, scoped, tag = 'output window, operand 0']
    %13 = vsyncpa [#allocation3], 0
    %14 = vsyncpa [#allocation6], 0
    %15 = vsyncpa [#allocation4], 0
    %s16 = scalar_lea.sflag [#allocation4], 1
    %17 = vsyncpa %s16, 0
    loop: start=0, step=1, limit=6
    $region2: #{tpu_custom_call.1} parent=1 // loop_pre_header
      _
    $region3: #{tpu_custom_call.1} parent=1 // loop_header
      %s19 = sphi 0, %s23
      %p20 = scmp.ge.s32.totalorder %s19, 6
      %s29 = sphi 0, %s31
      %s32 = sphi 0, %s29
      %s33 = sphi 0, %s32
      %s49 = sphi 0, %s33
      %s55 = sphi 0, %s57
      %s58 = sphi 0, %s55
      %s59 = sphi 0, %s58
      %s75 = sphi 0, %s59
      %s79 = sphi 0, %s79
      %s81 = sphi 0, %s79
      %s82 = sphi 0, %s81
      %s96 = sphi 0, %s82
      %s100 = sphi 0, %s100
      %s102 = sphi 0, %s100
      %s103 = sphi 0, %s102
      %s117 = sphi 0, %s103
      %s121 = sphi 0, %s121
      %s123 = sphi 0, %s121
      %s124 = sphi 0, %s123
      %s138 = sphi 0, %s124
      %s142 = sphi 0, %s142
      %s144 = sphi 0, %s142
      %s145 = sphi 0, %s144
      %s159 = sphi 0, %s145
      %s163 = sphi 0, %s163
      %s165 = sphi 0, %s163
      %s166 = sphi 0, %s165
      %s180 = sphi 0, %s166
      %s184 = sphi 0, %s184
      %s186 = sphi 0, %s184
      %s187 = sphi 0, %s186
      %s201 = sphi 0, %s187
      %s207 = sphi 0, %s209
      %s210 = sphi 0, %s207
      %s211 = sphi 0, %s210
      %s227 = sphi 0, %s211
    $region4: #{tpu_custom_call.1} parent=1 // loop_header_branch
      %22 = sbr.rel (%p20) target = $region8
    $region5: #{tpu_custom_call.1} parent=1 // loop_body
      %s24 = ssub.s32 %s19, 1
      %s25 = ssub.s32 %s19, 2
      %s26 = sadd.s32 %s19, 1
      %s27 = ssub.s32 %s19, %s26
      %p28 = scmp.eq.s32.totalorder %s27, 0
      %s30 = sadd.s32 %s29, 1
      %s31 = scalar_select %p28, %s29, %s30
      %p34 = pneg %p28
      %p35 = scmp.eq.s32.totalorder %s19, 3
      %p36 = por %p34, %p35
      %p37 = scmp.ne.s32.totalorder %s29, %s32
      %p38 = scmp.eq.s32.totalorder %s19, 0
      %p39 = por %p37, %p38
      %p40 = scmp.ne.s32.totalorder %s29, %s32
      %p41 = scmp.eq.s32.totalorder %s24, 3
      %p42 = por %p40, %p41
      %p43 = scmp.ne.s32.totalorder %s32, %s33
      %p44 = scmp.eq.s32.totalorder %s24, 0
      %p45 = por %p43, %p44
      %p46 = scmp.ne.s32.totalorder %s32, %s33
      %p47 = scmp.eq.s32.totalorder %s25, 3
      %p48 = por %p46, %p47
      %p50 = scmp.ne.s32.totalorder %s33, %s49
      %p51 = scmp.eq.s32.totalorder %s25, 0
      %p52 = por %p50, %p51
      %s53 = ssub.s32 %s19, %s26
      %p54 = scmp.eq.s32.totalorder %s53, 0
      %s56 = sadd.s32 %s55, 1
      %s57 = scalar_select %p54, %s55, %s56
      %p60 = pneg %p54
      %p61 = scmp.eq.s32.totalorder %s19, 3
      %p62 = por %p60, %p61
      %p63 = scmp.ne.s32.totalorder %s55, %s58
      %p64 = scmp.eq.s32.totalorder %s19, 0
      %p65 = por %p63, %p64
      %p66 = scmp.ne.s32.totalorder %s55, %s58
      %p67 = scmp.eq.s32.totalorder %s24, 3
      %p68 = por %p66, %p67
      %p69 = scmp.ne.s32.totalorder %s58, %s59
      %p70 = scmp.eq.s32.totalorder %s24, 0
      %p71 = por %p69, %p70
      %p72 = scmp.ne.s32.totalorder %s58, %s59
      %p73 = scmp.eq.s32.totalorder %s25, 3
      %p74 = por %p72, %p73
      %p76 = scmp.ne.s32.totalorder %s59, %s75
      %p77 = scmp.eq.s32.totalorder %s25, 0
      %p78 = por %p76, %p77
      %s80 = sadd.s32 %s79, 1
      %p83 = scmp.eq.s32.totalorder %s19, 3
      %p84 = scmp.ne.s32.totalorder %s79, %s81
      %p85 = scmp.eq.s32.totalorder %s19, 0
      %p86 = por %p84, %p85
      %p87 = scmp.ne.s32.totalorder %s79, %s81
      %p88 = scmp.eq.s32.totalorder %s24, 3
      %p89 = por %p87, %p88
      %p90 = scmp.ne.s32.totalorder %s81, %s82
      %p91 = scmp.eq.s32.totalorder %s24, 0
      %p92 = por %p90, %p91
      %p93 = scmp.ne.s32.totalorder %s81, %s82
      %p94 = scmp.eq.s32.totalorder %s25, 3
      %p95 = por %p93, %p94
      %p97 = scmp.ne.s32.totalorder %s82, %s96
      %p98 = scmp.eq.s32.totalorder %s25, 0
      %p99 = por %p97, %p98
      %s101 = sadd.s32 %s100, 1
      %p104 = scmp.eq.s32.totalorder %s19, 3
      %p105 = scmp.ne.s32.totalorder %s100, %s102
      %p106 = scmp.eq.s32.totalorder %s19, 0
      %p107 = por %p105, %p106
      %p108 = scmp.ne.s32.totalorder %s100, %s102
      %p109 = scmp.eq.s32.totalorder %s24, 3
      %p110 = por %p108, %p109
      %p111 = scmp.ne.s32.totalorder %s102, %s103
      %p112 = scmp.eq.s32.totalorder %s24, 0
      %p113 = por %p111, %p112
      %p114 = scmp.ne.s32.totalorder %s102, %s103
      %p115 = scmp.eq.s32.totalorder %s25, 3
      %p116 = por %p114, %p115
      %p118 = scmp.ne.s32.totalorder %s103, %s117
      %p119 = scmp.eq.s32.totalorder %s25, 0
      %p120 = por %p118, %p119
      %s122 = sadd.s32 %s121, 1
      %p125 = scmp.eq.s32.totalorder %s19, 3
      %p126 = scmp.ne.s32.totalorder %s121, %s123
      %p127 = scmp.eq.s32.totalorder %s19, 0
      %p128 = por %p126, %p127
      %p129 = scmp.ne.s32.totalorder %s121, %s123
      %p130 = scmp.eq.s32.totalorder %s24, 3
      %p131 = por %p129, %p130
      %p132 = scmp.ne.s32.totalorder %s123, %s124
      %p133 = scmp.eq.s32.totalorder %s24, 0
      %p134 = por %p132, %p133
      %p135 = scmp.ne.s32.totalorder %s123, %s124
      %p136 = scmp.eq.s32.totalorder %s25, 3
      %p137 = por %p135, %p136
      %p139 = scmp.ne.s32.totalorder %s124, %s138
      %p140 = scmp.eq.s32.totalorder %s25, 0
      %p141 = por %p139, %p140
      %s143 = sadd.s32 %s142, 1
      %p146 = scmp.eq.s32.totalorder %s19, 3
      %p147 = scmp.ne.s32.totalorder %s142, %s144
      %p148 = scmp.eq.s32.totalorder %s19, 0
      %p149 = por %p147, %p148
      %p150 = scmp.ne.s32.totalorder %s142, %s144
      %p151 = scmp.eq.s32.totalorder %s24, 3
      %p152 = por %p150, %p151
      %p153 = scmp.ne.s32.totalorder %s144, %s145
      %p154 = scmp.eq.s32.totalorder %s24, 0
      %p155 = por %p153, %p154
      %p156 = scmp.ne.s32.totalorder %s144, %s145
      %p157 = scmp.eq.s32.totalorder %s25, 3
      %p158 = por %p156, %p157
      %p160 = scmp.ne.s32.totalorder %s145, %s159
      %p161 = scmp.eq.s32.totalorder %s25, 0
      %p162 = por %p160, %p161
      %s164 = sadd.s32 %s163, 1
      %p167 = scmp.eq.s32.totalorder %s19, 3
      %p168 = scmp.ne.s32.totalorder %s163, %s165
      %p169 = scmp.eq.s32.totalorder %s19, 0
      %p170 = por %p168, %p169
      %p171 = scmp.ne.s32.totalorder %s163, %s165
      %p172 = scmp.eq.s32.totalorder %s24, 3
      %p173 = por %p171, %p172
      %p174 = scmp.ne.s32.totalorder %s165, %s166
      %p175 = scmp.eq.s32.totalorder %s24, 0
      %p176 = por %p174, %p175
      %p177 = scmp.ne.s32.totalorder %s165, %s166
      %p178 = scmp.eq.s32.totalorder %s25, 3
      %p179 = por %p177, %p178
      %p181 = scmp.ne.s32.totalorder %s166, %s180
      %p182 = scmp.eq.s32.totalorder %s25, 0
      %p183 = por %p181, %p182
      %s185 = sadd.s32 %s184, 1
      %p188 = scmp.eq.s32.totalorder %s19, 3
      %p189 = scmp.ne.s32.totalorder %s184, %s186
      %p190 = scmp.eq.s32.totalorder %s19, 0
      %p191 = por %p189, %p190
      %p192 = scmp.ne.s32.totalorder %s184, %s186
      %p193 = scmp.eq.s32.totalorder %s24, 3
      %p194 = por %p192, %p193
      %p195 = scmp.ne.s32.totalorder %s186, %s187
      %p196 = scmp.eq.s32.totalorder %s24, 0
      %p197 = por %p195, %p196
      %p198 = scmp.ne.s32.totalorder %s186, %s187
      %p199 = scmp.eq.s32.totalorder %s25, 3
      %p200 = por %p198, %p199
      %p202 = scmp.ne.s32.totalorder %s187, %s201
      %p203 = scmp.eq.s32.totalorder %s25, 0
      %p204 = por %p202, %p203
      %s205 = ssub.s32 %s19, %s26
      %p206 = scmp.eq.s32.totalorder %s205, 0
      %s208 = sadd.s32 %s207, 1
      %s209 = scalar_select %p206, %s207, %s208
      %p212 = pneg %p206
      %p213 = scmp.eq.s32.totalorder %s19, 3
      %p214 = por %p212, %p213
      %p215 = scmp.ne.s32.totalorder %s207, %s210
      %p216 = scmp.eq.s32.totalorder %s19, 0
      %p217 = por %p215, %p216
      %p218 = scmp.ne.s32.totalorder %s207, %s210
      %p219 = scmp.eq.s32.totalorder %s24, 3
      %p220 = por %p218, %p219
      %p221 = scmp.ne.s32.totalorder %s210, %s211
      %p222 = scmp.eq.s32.totalorder %s24, 0
      %p223 = por %p221, %p222
      %p224 = scmp.ne.s32.totalorder %s210, %s211
      %p225 = scmp.eq.s32.totalorder %s25, 3
      %p226 = por %p224, %p225
      %p228 = scmp.ne.s32.totalorder %s211, %s227
      %p229 = scmp.eq.s32.totalorder %s25, 0
      %p230 = por %p228, %p229
      %p231 = scmp.le.s32.totalorder 1, %s19
      %p232 = scmp.lt.s32.totalorder %s19, 5
      %p233 = pnand %p231, %p232
      %p234 = pneg %p233
      // Predicated region
      $region9: #{tpu_custom_call.1} parent=5 // pred_check
        _
      $region10: #{tpu_custom_call.1} parent=5 // pred_check_branch
        %236 = sbr.rel (%p233) target = $region12
      $region11: #{tpu_custom_call.1} parent=5 // pred_region
        %s237 = ssub.s32 %s19, 1
        // Predicated region
        $region13: #{tpu_custom_call.1} parent=11 // pred_check
          %p238 = pneg %p92
        $region14: #{tpu_custom_call.1} parent=11 // pred_check_branch
          %240 = sbr.rel (%p238) target = $region16
        $region15: #{tpu_custom_call.1} parent=11 // pred_region
          _
        $region16: #{tpu_custom_call.1} parent=11 // pred_fallthru
          _
        // Predicated region
        $region17: #{tpu_custom_call.1} parent=11 // pred_check
          %p241 = pneg %p113
        $region18: #{tpu_custom_call.1} parent=11 // pred_check_branch
          %243 = sbr.rel (%p241) target = $region20
        $region19: #{tpu_custom_call.1} parent=11 // pred_region
          _
        $region20: #{tpu_custom_call.1} parent=11 // pred_fallthru
          _
        // Predicated region
        $region21: #{tpu_custom_call.1} parent=11 // pred_check
          %p244 = pneg %p134
        $region22: #{tpu_custom_call.1} parent=11 // pred_check_branch
          %246 = sbr.rel (%p244) target = $region24
        $region23: #{tpu_custom_call.1} parent=11 // pred_region
          %s248 = ssub.s32 2048, 2048
          %249 = vsyncadd [#allocation3], %s248
          %s250 = sshll.u32 [#allocation2], 4
          %s251 = int_to_ptr.vmem [resolvable:$true] %s250
          %256 = dma.hbm_to_vmem [thread:$0]  %s4, 2048, %s251, [#allocation3], 64, 64, 4
        $region24: #{tpu_custom_call.1} parent=11 // pred_fallthru
          _
        // Predicated region
        $region25: #{tpu_custom_call.1} parent=11 // pred_check
          %p257 = pneg %p155
        $region26: #{tpu_custom_call.1} parent=11 // pred_check_branch
          %259 = sbr.rel (%p257) target = $region28
        $region27: #{tpu_custom_call.1} parent=11 // pred_region
          _
        $region28: #{tpu_custom_call.1} parent=11 // pred_fallthru
          _
        // Predicated region
        $region29: #{tpu_custom_call.1} parent=11 // pred_check
          %p260 = pneg %p176
        $region30: #{tpu_custom_call.1} parent=11 // pred_check_branch
          %262 = sbr.rel (%p260) target = $region32
        $region31: #{tpu_custom_call.1} parent=11 // pred_region
          %s264 = ssub.s32 1024, 1024
          %265 = vsyncadd [#allocation6], %s264
          %s266 = sshll.u32 [#allocation5], 4
          %s267 = int_to_ptr.vmem [resolvable:$true] %s266
          %272 = dma.hbm_to_vmem [thread:$0]  %s6, 1024, %s267, [#allocation6], 64, 64, 4
        $region32: #{tpu_custom_call.1} parent=11 // pred_fallthru
          _
        // Predicated region
        $region33: #{tpu_custom_call.1} parent=11 // pred_check
          %p273 = pneg %p197
        $region34: #{tpu_custom_call.1} parent=11 // pred_check_branch
          %275 = sbr.rel (%p273) target = $region36
        $region35: #{tpu_custom_call.1} parent=11 // pred_region
          _
        $region36: #{tpu_custom_call.1} parent=11 // pred_fallthru
          _
      $region12: #{tpu_custom_call.1} parent=5 // pred_fallthru
        _
      %p276 = scmp.lt.s32.totalorder %s19, 4
      // Predicated region
      $region37: #{tpu_custom_call.1} parent=5 // pred_check
        %p277 = pneg %p276
      $region38: #{tpu_custom_call.1} parent=5 // pred_check_branch
        %279 = sbr.rel (%p277) target = $region40
      $region39: #{tpu_custom_call.1} parent=5 // pred_region
        // Predicated region
        $region41: #{tpu_custom_call.1} parent=39 // pred_check
          %p280 = pneg %p39
        $region42: #{tpu_custom_call.1} parent=39 // pred_check_branch
          %282 = sbr.rel (%p280) target = $region44
        $region43: #{tpu_custom_call.1} parent=39 // pred_region
          %p283 = scmp.lt.s32.totalorder %s19, 3
          %s284 = scalar_select %p283, %s19, 3
          %s285 = smul.addr %s284, 2
          %s286 = smul.addr %s285, 4
          %s287 = scalar_lea.vmem %s0, %s286
        $region44: #{tpu_custom_call.1} parent=39 // pred_fallthru
          _
        // Predicated region
        $region45: #{tpu_custom_call.1} parent=39 // pred_check
          %p288 = pneg %p65
        $region46: #{tpu_custom_call.1} parent=39 // pred_check_branch
          %290 = sbr.rel (%p288) target = $region48
        $region47: #{tpu_custom_call.1} parent=39 // pred_region
          %p291 = scmp.lt.s32.totalorder %s19, 3
          %s292 = scalar_select %p291, %s19, 3
          %s293 = smul.addr %s292, 2
          %s294 = smul.addr %s293, 4
          %s295 = scalar_lea.vmem %s1, %s294
        $region48: #{tpu_custom_call.1} parent=39 // pred_fallthru
          _
      $region40: #{tpu_custom_call.1} parent=5 // pred_fallthru
        _
      %p296 = scmp.le.s32.totalorder 1, %s19
      %p297 = scmp.lt.s32.totalorder %s19, 5
      %p298 = pnand %p296, %p297
      %p299 = pneg %p298
      // Predicated region
      $region49: #{tpu_custom_call.1} parent=5 // pred_check
        _
      $region50: #{tpu_custom_call.1} parent=5 // pred_check_branch
        %301 = sbr.rel (%p298) target = $region52
      $region51: #{tpu_custom_call.1} parent=5 // pred_region
        %s302 = ssub.s32 %s19, 1
        // Predicated region
        $region53: #{tpu_custom_call.1} parent=51 // pred_check
          %p303 = pneg %p134
        $region54: #{tpu_custom_call.1} parent=51 // pred_check_branch
          %305 = sbr.rel (%p303) target = $region56
        $region55: #{tpu_custom_call.1} parent=51 // pred_region
          %306 = dma.done [#allocation3], 2048
        $region56: #{tpu_custom_call.1} parent=51 // pred_fallthru
          _
        // Predicated region
        $region57: #{tpu_custom_call.1} parent=51 // pred_check
          %p307 = pneg %p176
        $region58: #{tpu_custom_call.1} parent=51 // pred_check_branch
          %309 = sbr.rel (%p307) target = $region60
        $region59: #{tpu_custom_call.1} parent=51 // pred_region
          %310 = dma.done [#allocation6], 1024
        $region60: #{tpu_custom_call.1} parent=51 // pred_fallthru
          _
        %p311 = scmp.lt.s32.totalorder %s24, 3
        %s312 = scalar_select %p311, %s24, 3
        %s313 = smul.addr %s312, 2
        %s314 = smul.addr %s313, 4
        %s315 = scalar_lea.vmem %s0, %s314
        %p316 = pneg %p45
        %p317 = pneg %p42
        %p318 = scmp.lt.s32.totalorder %s24, 3
        %s319 = scalar_select %p318, %s24, 3
        %s320 = smul.addr %s319, 2
        %s321 = smul.addr %s320, 4
        %s322 = scalar_lea.vmem %s1, %s321
        %p323 = pneg %p71
        %p324 = pneg %p68
        %p325 = pneg %p92
        %p326 = pneg %p89
        %p327 = pneg %p113
        %p328 = pneg %p110
        %p329 = pneg %p134
        %p330 = pneg %p131
        %p331 = pneg %p155
        %p332 = pneg %p152
        %p333 = pneg %p176
        %p334 = pneg %p173
        %p335 = pneg %p197
        %p336 = pneg %p194
        %p337 = pneg %p223
        %p338 = pneg %p220
        %s339 = sand.u32 %s210, 1
        %s340 = scalar_lea.sflag [#allocation4], %s339
        %s341 = sand.u32 %s210, 1
        %s342 = scalar_lea.vmem [#allocation7], %s341
        %p343 = scmp.lt.s32.totalorder %s24, 3
        %s344 = scalar_select %p343, %s24, 3
        %s345 = smul.addr %s344, 2
        %s346 = smul.addr %s345, 4
        %s347 = scalar_lea.vmem %s0, %s346
        %p348 = scmp.lt.s32.totalorder %s24, 3
        %s349 = scalar_select %p348, %s24, 3
        %s350 = smul.addr %s349, 2
        %s351 = smul.addr %s350, 4
        %s352 = scalar_lea.vmem %s1, %s351
        %v354 = vld [vmem:[%s352] sm:$0xf]
        %v355 = vld [vmem:[%s352 + $0x4] sm:$0xf]
        %v356 = vld [vmem:[%s347] sm:$0xf]
        %v357 = vld [vmem:[%s347 + $0x4] sm:$0xf]
        %v360 = vunpack.c.l.b16 %v354
        %v361 = vunpack.c.l.b16 %v355
        %v362 = vpack.c.b16 %v361, %v360
        %v365 = vunpack.c.l.b16 %v356
        %v366 = vunpack.c.l.b16 %v357
        %v367 = vpack.c.b16 %v366, %v365
        %vm369 = vcmask 130048
        %v371 = vsel %vm369, %v362, 0
        %373 = vmatprep.subr.bf16.mxu0 0
        %374 = vmatpush1.bf16.msra.mxu0 %v367
        %375 = vmatprep.subr.bf16.mxu0 0
        %376 = vmatpush1.bf16.msra.mxu0 0
        %377 = vmatprep.subr.bf16.mxu0 0
        %378 = vmatpush1.bf16.msra.mxu0 0
        %379 = vmatprep.subr.bf16.mxu0 0
        %380 = vmatpush1.bf16.msra.mxu0 0
        %381 = vmatprep.subr.bf16.mxu0 0
        %382 = vmatpush1.bf16.msra.mxu0 0
        %383 = vmatprep.subr.bf16.mxu0 0
        %384 = vmatpush1.bf16.msra.mxu0 0
        %385 = vmatprep.subr.bf16.mxu0 0
        %386 = vmatpush1.bf16.msra.mxu0 0
        %387 = vmatprep.subr.bf16.mxu0 0
        %388 = vmatpush1.bf16.msra.mxu0 0
        %389 = vmatprep.subr.bf16.mxu0 0
        %390 = vmatpush1.bf16.msra.mxu0 0
        %391 = vmatprep.subr.bf16.mxu0 0
        %392 = vmatpush1.bf16.msra.mxu0 0
        %393 = vmatprep.subr.bf16.mxu0 0
        %394 = vmatpush1.bf16.msra.mxu0 0
        %395 = vmatprep.subr.bf16.mxu0 0
        %396 = vmatpush1.bf16.msra.mxu0 0
        %397 = vmatprep.subr.bf16.mxu0 0
        %398 = vmatpush1.bf16.msra.mxu0 0
        %399 = vmatprep.subr.bf16.mxu0 0
        %400 = vmatpush1.bf16.msra.mxu0 0
        %401 = vmatprep.subr.bf16.mxu0 0
        %402 = vmatpush1.bf16.msra.mxu0 0
        %403 = vmatprep.subr.bf16.mxu0 0
        %404 = vmatpush1.bf16.msra.mxu0 0
        %405 = vmatprep.mubr.bf16.mxu0 0
        %406 = vmatmul.mubr.bf16.gmra.mrb[0].mxu0 %v371
        %v407 = vpop.f32.mrb[0].mxu0
        %v408 = vadd.f32 0.0, %v407
        %v409 = vpop.f32.mrb[0].mxu0
        %v410 = vpop.f32.mrb[0].mxu0
        %v411 = vadd.f32 0.0, %v410
        %v412 = vpop.f32.mrb[0].mxu0
        %413 = vdwg.mxu0
        %v414 = vpack.c.bf16 %v411, %v408
        %v415 = vld [vmem:[%s2] sm:$0x3]
        %v416 = vld [vmem:[%s3] sm:$0x1]
        %v418 = vlaneseq
        %v419 = vshrl.u32 %v418, 7
        %v420 = vsub.s32 0, %v419
        %v421 = vrot.slane %v416, %v420
        %vm423 = vcmask 31744
        %v425 = vsel %vm423, %v414, 0
        %vm427 = vcmask 1041408
        %v429 = vsel %vm427, %v415, 0
        %431 = vmatprep.subr.bf16.mxu0 0
        %432 = vmatpush1.bf16.msra.mxu0 %v429
        %433 = vmatprep.subr.bf16.mxu0 0
        %434 = vmatpush1.bf16.msra.mxu0 0
        %435 = vmatprep.subr.bf16.mxu0 0
        %436 = vmatpush1.bf16.msra.mxu0 0
        %437 = vmatprep.subr.bf16.mxu0 0
        %438 = vmatpush1.bf16.msra.mxu0 0
        %439 = vmatprep.subr.bf16.mxu0 0
        %440 = vmatpush1.bf16.msra.mxu0 0
        %441 = vmatprep.subr.bf16.mxu0 0
        %442 = vmatpush1.bf16.msra.mxu0 0
        %443 = vmatprep.subr.bf16.mxu0 0
        %444 = vmatpush1.bf16.msra.mxu0 0
        %445 = vmatprep.subr.bf16.mxu0 0
        %446 = vmatpush1.bf16.msra.mxu0 0
        %447 = vmatprep.subr.bf16.mxu0 0
        %448 = vmatpush1.bf16.msra.mxu0 0
        %449 = vmatprep.subr.bf16.mxu0 0
        %450 = vmatpush1.bf16.msra.mxu0 0
        %451 = vmatprep.subr.bf16.mxu0 0
        %452 = vmatpush1.bf16.msra.mxu0 0
        %453 = vmatprep.subr.bf16.mxu0 0
        %454 = vmatpush1.bf16.msra.mxu0 0
        %455 = vmatprep.subr.bf16.mxu0 0
        %456 = vmatpush1.bf16.msra.mxu0 0
        %457 = vmatprep.subr.bf16.mxu0 0
        %458 = vmatpush1.bf16.msra.mxu0 0
        %459 = vmatprep.subr.bf16.mxu0 0
        %460 = vmatpush1.bf16.msra.mxu0 0
        %461 = vmatprep.subr.bf16.mxu0 0
        %462 = vmatpush1.bf16.msra.mxu0 0
        %463 = vmatprep.mubr.bf16.mxu0 0
        %464 = vmatmul.mubr.bf16.gmra.mrb[0].mxu0 %v425
        %v465 = vpop.f32.mrb[0].mxu0
        %v466 = vadd.f32 %v421, %v465
        %v467 = vpop.f32.mrb[0].mxu0
        %v468 = vpop.f32.mrb[0].mxu0
        %v469 = vadd.f32 %v421, %v468
        %v470 = vpop.f32.mrb[0].mxu0
        %471 = vdwg.mxu0
        %v472 = vmax.f32 %v466, 0.0
        %v473 = vmax.f32 %v469, 0.0
        %v474 = vld [vmem:[#allocation2] sm:$0xf]
        %v475 = vld [vmem:[#allocation2 + $0x4] sm:$0xf]
        %v476 = vld [vmem:[#allocation2 + $0x8] sm:$0xf]
        %v477 = vld [vmem:[#allocation2 + $0xc] sm:$0xf]
        %v478 = vld [vmem:[#allocation2 + $0x10] sm:$0xf]
        %v479 = vld [vmem:[#allocation2 + $0x14] sm:$0xf]
        %v480 = vld [vmem:[#allocation2 + $0x18] sm:$0xf]
        %v481 = vld [vmem:[#allocation2 + $0x1c] sm:$0xf]
        %v482 = vld [vmem:[#allocation2 + $0x20] sm:$0xf]
        %v483 = vld [vmem:[#allocation2 + $0x24] sm:$0xf]
        %v484 = vld [vmem:[#allocation2 + $0x28] sm:$0xf]
        %v485 = vld [vmem:[#allocation2 + $0x2c] sm:$0xf]
        %v486 = vld [vmem:[#allocation2 + $0x30] sm:$0xf]
        %v487 = vld [vmem:[#allocation2 + $0x34] sm:$0xf]
        %v488 = vld [vmem:[#allocation2 + $0x38] sm:$0xf]
        %v489 = vld [vmem:[#allocation2 + $0x3c] sm:$0xf]
        %v490 = vld [vmem:[%s5] sm:$0x1]
        %v491 = vpack.c.bf16 %v473, %v472
        %492 = vmatprep.subr.bf16.mxu0 0
        %493 = vmatpush1.bf16.msra.mxu0 %v491
        %494 = vmatprep.subr.bf16.mxu0 0
        %495 = vmatpush1.bf16.msra.mxu0 0
        %496 = vmatprep.subr.bf16.mxu0 0
        %497 = vmatpush1.bf16.msra.mxu0 0
        %498 = vmatprep.subr.bf16.mxu0 0
        %499 = vmatpush1.bf16.msra.mxu0 0
        %500 = vmatprep.subr.bf16.mxu0 0
        %501 = vmatpush1.bf16.msra.mxu0 0
        %502 = vmatprep.subr.bf16.mxu0 0
        %503 = vmatpush1.bf16.msra.mxu0 0
        %504 = vmatprep.subr.bf16.mxu0 0
        %505 = vmatpush1.bf16.msra.mxu0 0
        %506 = vmatprep.subr.bf16.mxu0 0
        %507 = vmatpush1.bf16.msra.mxu0 0
        %508 = vmatprep.subr.bf16.mxu0 0
        %509 = vmatpush1.bf16.msra.mxu0 0
        %510 = vmatprep.subr.bf16.mxu0 0
        %511 = vmatpush1.bf16.msra.mxu0 0
        %512 = vmatprep.subr.bf16.mxu0 0
        %513 = vmatpush1.bf16.msra.mxu0 0
        %514 = vmatprep.subr.bf16.mxu0 0
        %515 = vmatpush1.bf16.msra.mxu0 0
        %516 = vmatprep.subr.bf16.mxu0 0
        %517 = vmatpush1.bf16.msra.mxu0 0
        %518 = vmatprep.subr.bf16.mxu0 0
        %519 = vmatpush1.bf16.msra.mxu0 0
        %520 = vmatprep.subr.bf16.mxu0 0
        %521 = vmatpush1.bf16.msra.mxu0 0
        %522 = vmatprep.subr.bf16.mxu0 0
        %523 = vmatpush1.bf16.msra.mxu0 0
        %524 = vmatprep.mubr.bf16.mxu0 0
        %525 = vmatmul.mubr.bf16.gmra.mrb[0].mxu0 %v371
        %v526 = vpop.f32.mrb[0].mxu0
        %v527 = vadd.f32 0.0, %v526
        %v528 = vpop.f32.mrb[0].mxu0
        %v529 = vpop.f32.mrb[0].mxu0
        %v530 = vadd.f32 0.0, %v529
        %v531 = vpop.f32.mrb[0].mxu0
        %532 = vdwg.mxu0
        %v533 = vpack.c.bf16 %v530, %v527
        %v535 = vlaneseq
        %v536 = vshrl.u32 %v535, 7
        %v537 = vsub.s32 0, %v536
        %v538 = vrot.slane %v490, %v537
        %v556 = vunpack.c.l.b16 %v474
        %v557 = vunpack.c.l.b16 %v475
        %v558 = vunpack.c.l.b16 %v476
        %v559 = vunpack.c.l.b16 %v477
        %v560 = vunpack.c.l.b16 %v478
        %v561 = vunpack.c.l.b16 %v479
        %v562 = vunpack.c.l.b16 %v480
        %v563 = vunpack.c.l.b16 %v481
        %v564 = vunpack.c.l.b16 %v482
        %v565 = vunpack.c.l.b16 %v483
        %v566 = vunpack.c.l.b16 %v484
        %v567 = vunpack.c.l.b16 %v485
        %v568 = vunpack.c.l.b16 %v486
        %v569 = vunpack.c.l.b16 %v487
        %v570 = vunpack.c.l.b16 %v488
        %v571 = vunpack.c.l.b16 %v489
        %v572 = vpack.c.b16 %v557, %v556
        %v573 = vpack.c.b16 %v559, %v558
        %v574 = vpack.c.b16 %v561, %v560
        %v575 = vpack.c.b16 %v563, %v562
        %v576 = vpack.c.b16 %v565, %v564
        %v577 = vpack.c.b16 %v567, %v566
        %v578 = vpack.c.b16 %v569, %v568
        %v579 = vpack.c.b16 %v571, %v570
        %588 = vmatprep.subr.bf16.mxu0 0
        %589 = vmatpush1.bf16.msra.mxu0 %v572
        %590 = vmatprep.subr.bf16.mxu0 0
        %591 = vmatpush1.bf16.msra.mxu0 %v573
        %592 = vmatprep.subr.bf16.mxu0 0
        %593 = vmatpush1.bf16.msra.mxu0 %v574
        %594 = vmatprep.subr.bf16.mxu0 0
        %595 = vmatpush1.bf16.msra.mxu0 %v575
        %596 = vmatprep.subr.bf16.mxu0 0
        %597 = vmatpush1.bf16.msra.mxu0 %v576
        %598 = vmatprep.subr.bf16.mxu0 0
        %599 = vmatpush1.bf16.msra.mxu0 %v577
        %600 = vmatprep.subr.bf16.mxu0 0
        %601 = vmatpush1.bf16.msra.mxu0 %v578
        %602 = vmatprep.subr.bf16.mxu0 0
        %603 = vmatpush1.bf16.msra.mxu0 %v579
        %604 = vmatprep.subr.bf16.mxu0 0
        %605 = vmatpush1.bf16.msra.mxu0 0
        %606 = vmatprep.subr.bf16.mxu0 0
        %607 = vmatpush1.bf16.msra.mxu0 0
        %608 = vmatprep.subr.bf16.mxu0 0
        %609 = vmatpush1.bf16.msra.mxu0 0
        %610 = vmatprep.subr.bf16.mxu0 0
        %611 = vmatpush1.bf16.msra.mxu0 0
        %612 = vmatprep.subr.bf16.mxu0 0
        %613 = vmatpush1.bf16.msra.mxu0 0
        %614 = vmatprep.subr.bf16.mxu0 0
        %615 = vmatpush1.bf16.msra.mxu0 0
        %616 = vmatprep.subr.bf16.mxu0 0
        %617 = vmatpush1.bf16.msra.mxu0 0
        %618 = vmatprep.subr.bf16.mxu0 0
        %619 = vmatpush1.bf16.msra.mxu0 0
        %620 = vmatprep.mubr.bf16.mxu0 0
        %621 = vmatmul.mubr.bf16.gmra.mrb[0].mxu0 %v533
        %v622 = vpop.f32.mrb[0].mxu0
        %v623 = vadd.f32 %v538, %v622
        %v624 = vpop.f32.mrb[0].mxu0
        %v625 = vpop.f32.mrb[0].mxu0
        %v626 = vadd.f32 %v538, %v625
        %v627 = vpop.f32.mrb[0].mxu0
        %628 = vdwg.mxu0
        %v629 = vmax.f32 %v623, 0.0
        %v630 = vmax.f32 %v626, 0.0
        %s631 = scalar_lea.vmem [#allocation2], 64
        %v632 = vld [vmem:[%s631] sm:$0xf]
        %v633 = vld [vmem:[%s631 + $0x4] sm:$0xf]
        %v634 = vld [vmem:[%s631 + $0x8] sm:$0xf]
        %v635 = vld [vmem:[%s631 + $0xc] sm:$0xf]
        %v636 = vld [vmem:[%s631 + $0x10] sm:$0xf]
        %v637 = vld [vmem:[%s631 + $0x14] sm:$0xf]
        %v638 = vld [vmem:[%s631 + $0x18] sm:$0xf]
        %v639 = vld [vmem:[%s631 + $0x1c] sm:$0xf]
        %v640 = vld [vmem:[%s631 + $0x20] sm:$0xf]
        %v641 = vld [vmem:[%s631 + $0x24] sm:$0xf]
        %v642 = vld [vmem:[%s631 + $0x28] sm:$0xf]
        %v643 = vld [vmem:[%s631 + $0x2c] sm:$0xf]
        %v644 = vld [vmem:[%s631 + $0x30] sm:$0xf]
        %v645 = vld [vmem:[%s631 + $0x34] sm:$0xf]
        %v646 = vld [vmem:[%s631 + $0x38] sm:$0xf]
        %v647 = vld [vmem:[%s631 + $0x3c] sm:$0xf]
        %s648 = scalar_lea.vmem %s5, 1
        %v649 = vld [vmem:[%s648] sm:$0x1]
        %v650 = vpack.c.bf16 %v630, %v629
        %651 = vmatprep.subr.bf16.mxu0 0
        %652 = vmatpush1.bf16.msra.mxu0 %v650
        %653 = vmatprep.subr.bf16.mxu0 0
        %654 = vmatpush1.bf16.msra.mxu0 0
        %655 = vmatprep.subr.bf16.mxu0 0
        %656 = vmatpush1.bf16.msra.mxu0 0
        %657 = vmatprep.subr.bf16.mxu0 0
        %658 = vmatpush1.bf16.msra.mxu0 0
        %659 = vmatprep.subr.bf16.mxu0 0
        %660 = vmatpush1.bf16.msra.mxu0 0
        %661 = vmatprep.subr.bf16.mxu0 0
        %662 = vmatpush1.bf16.msra.mxu0 0
        %663 = vmatprep.subr.bf16.mxu0 0
        %664 = vmatpush1.bf16.msra.mxu0 0
        %665 = vmatprep.subr.bf16.mxu0 0
        %666 = vmatpush1.bf16.msra.mxu0 0
        %667 = vmatprep.subr.bf16.mxu0 0
        %668 = vmatpush1.bf16.msra.mxu0 0
        %669 = vmatprep.subr.bf16.mxu0 0
        %670 = vmatpush1.bf16.msra.mxu0 0
        %671 = vmatprep.subr.bf16.mxu0 0
        %672 = vmatpush1.bf16.msra.mxu0 0
        %673 = vmatprep.subr.bf16.mxu0 0
        %674 = vmatpush1.bf16.msra.mxu0 0
        %675 = vmatprep.subr.bf16.mxu0 0
        %676 = vmatpush1.bf16.msra.mxu0 0
        %677 = vmatprep.subr.bf16.mxu0 0
        %678 = vmatpush1.bf16.msra.mxu0 0
        %679 = vmatprep.subr.bf16.mxu0 0
        %680 = vmatpush1.bf16.msra.mxu0 0
        %681 = vmatprep.subr.bf16.mxu0 0
        %682 = vmatpush1.bf16.msra.mxu0 0
        %683 = vmatprep.mubr.bf16.mxu0 0
        %684 = vmatmul.mubr.bf16.gmra.mrb[0].mxu0 %v371
        %v685 = vpop.f32.mrb[0].mxu0
        %v686 = vadd.f32 0.0, %v685
        %v687 = vpop.f32.mrb[0].mxu0
        %v688 = vpop.f32.mrb[0].mxu0
        %v689 = vadd.f32 0.0, %v688
        %v690 = vpop.f32.mrb[0].mxu0
        %691 = vdwg.mxu0
        %v692 = vpack.c.bf16 %v689, %v686
        %v694 = vlaneseq
        %v695 = vshrl.u32 %v694, 7
        %v696 = vsub.s32 0, %v695
        %v697 = vrot.slane %v649, %v696
        %v715 = vunpack.c.l.b16 %v632
        %v716 = vunpack.c.l.b16 %v633
        %v717 = vunpack.c.l.b16 %v634
        %v718 = vunpack.c.l.b16 %v635
        %v719 = vunpack.c.l.b16 %v636
        %v720 = vunpack.c.l.b16 %v637
        %v721 = vunpack.c.l.b16 %v638
        %v722 = vunpack.c.l.b16 %v639
        %v723 = vunpack.c.l.b16 %v640
        %v724 = vunpack.c.l.b16 %v641
        %v725 = vunpack.c.l.b16 %v642
        %v726 = vunpack.c.l.b16 %v643
        %v727 = vunpack.c.l.b16 %v644
        %v728 = vunpack.c.l.b16 %v645
        %v729 = vunpack.c.l.b16 %v646
        %v730 = vunpack.c.l.b16 %v647
        %v731 = vpack.c.b16 %v716, %v715
        %v732 = vpack.c.b16 %v718, %v717
        %v733 = vpack.c.b16 %v720, %v719
        %v734 = vpack.c.b16 %v722, %v721
        %v735 = vpack.c.b16 %v724, %v723
        %v736 = vpack.c.b16 %v726, %v725
        %v737 = vpack.c.b16 %v728, %v727
        %v738 = vpack.c.b16 %v730, %v729
        %747 = vmatprep.subr.bf16.mxu0 0
        %748 = vmatpush1.bf16.msra.mxu0 %v731
        %749 = vmatprep.subr.bf16.mxu0 0
        %750 = vmatpush1.bf16.msra.mxu0 %v732
        %751 = vmatprep.subr.bf16.mxu0 0
        %752 = vmatpush1.bf16.msra.mxu0 %v733
        %753 = vmatprep.subr.bf16.mxu0 0
        %754 = vmatpush1.bf16.msra.mxu0 %v734
        %755 = vmatprep.subr.bf16.mxu0 0
        %756 = vmatpush1.bf16.msra.mxu0 %v735
        %757 = vmatprep.subr.bf16.mxu0 0
        %758 = vmatpush1.bf16.msra.mxu0 %v736
        %759 = vmatprep.subr.bf16.mxu0 0
        %760 = vmatpush1.bf16.msra.mxu0 %v737
        %761 = vmatprep.subr.bf16.mxu0 0
        %762 = vmatpush1.bf16.msra.mxu0 %v738
        %763 = vmatprep.subr.bf16.mxu0 0
        %764 = vmatpush1.bf16.msra.mxu0 0
        %765 = vmatprep.subr.bf16.mxu0 0
        %766 = vmatpush1.bf16.msra.mxu0 0
        %767 = vmatprep.subr.bf16.mxu0 0
        %768 = vmatpush1.bf16.msra.mxu0 0
        %769 = vmatprep.subr.bf16.mxu0 0
        %770 = vmatpush1.bf16.msra.mxu0 0
        %771 = vmatprep.subr.bf16.mxu0 0
        %772 = vmatpush1.bf16.msra.mxu0 0
        %773 = vmatprep.subr.bf16.mxu0 0
        %774 = vmatpush1.bf16.msra.mxu0 0
        %775 = vmatprep.subr.bf16.mxu0 0
        %776 = vmatpush1.bf16.msra.mxu0 0
        %777 = vmatprep.subr.bf16.mxu0 0
        %778 = vmatpush1.bf16.msra.mxu0 0
        %779 = vmatprep.mubr.bf16.mxu0 0
        %780 = vmatmul.mubr.bf16.gmra.mrb[0].mxu0 %v692
        %v781 = vpop.f32.mrb[0].mxu0
        %v782 = vadd.f32 %v697, %v781
        %v783 = vpop.f32.mrb[0].mxu0
        %v784 = vpop.f32.mrb[0].mxu0
        %v785 = vadd.f32 %v697, %v784
        %v786 = vpop.f32.mrb[0].mxu0
        %787 = vdwg.mxu0
        %v788 = vmax.f32 %v782, 0.0
        %v789 = vmax.f32 %v785, 0.0
        %v790 = vadd.f32 %v788, %v789
        %v791 = vrot.slane %v790, 4
        %v792 = vadd.f32 %v790, %v791
        %v793 = vrot.slane %v792, 2
        %v794 = vadd.f32 %v792, %v793
        %v795 = vrot.slane %v794, 1
        %v796 = vadd.f32 %v794, %v795
        %v797 = vrcp.pop 16.0
        %v798 = vmul.f32 %v796, %v797
        %v799 = vpack.c.bf16 %v798, %v798
        %v800 = vld [vmem:[#allocation5] sm:$0xf]
        %v801 = vld [vmem:[#allocation5 + $0x4] sm:$0xf]
        %v802 = vld [vmem:[#allocation5 + $0x8] sm:$0xf]
        %v803 = vld [vmem:[#allocation5 + $0xc] sm:$0xf]
        %v804 = vld [vmem:[#allocation5 + $0x10] sm:$0xf]
        %v805 = vld [vmem:[#allocation5 + $0x14] sm:$0xf]
        %v806 = vld [vmem:[#allocation5 + $0x18] sm:$0xf]
        %v807 = vld [vmem:[#allocation5 + $0x1c] sm:$0xf]
        %v808 = vld [vmem:[#allocation5 + $0x20] sm:$0xf]
        %v809 = vld [vmem:[#allocation5 + $0x24] sm:$0xf]
        %v810 = vld [vmem:[#allocation5 + $0x28] sm:$0xf]
        %v811 = vld [vmem:[#allocation5 + $0x2c] sm:$0xf]
        %v812 = vld [vmem:[#allocation5 + $0x30] sm:$0xf]
        %v813 = vld [vmem:[#allocation5 + $0x34] sm:$0xf]
        %v814 = vld [vmem:[#allocation5 + $0x38] sm:$0xf]
        %v815 = vld [vmem:[#allocation5 + $0x3c] sm:$0xf]
        %v816 = vld [vmem:[%s7] sm:$0x1]
        %v833 = vunpack.c.l.b16 %v800
        %v834 = vunpack.c.l.b16 %v801
        %v835 = vunpack.c.l.b16 %v802
        %v836 = vunpack.c.l.b16 %v803
        %v837 = vunpack.c.l.b16 %v804
        %v838 = vunpack.c.l.b16 %v805
        %v839 = vunpack.c.l.b16 %v806
        %v840 = vunpack.c.l.b16 %v807
        %v841 = vunpack.c.l.b16 %v808
        %v842 = vunpack.c.l.b16 %v809
        %v843 = vunpack.c.l.b16 %v810
        %v844 = vunpack.c.l.b16 %v811
        %v845 = vunpack.c.l.b16 %v812
        %v846 = vunpack.c.l.b16 %v813
        %v847 = vunpack.c.l.b16 %v814
        %v848 = vunpack.c.l.b16 %v815
        %v849 = vpack.c.b16 %v834, %v833
        %v850 = vpack.c.b16 %v836, %v835
        %v851 = vpack.c.b16 %v838, %v837
        %v852 = vpack.c.b16 %v840, %v839
        %v853 = vpack.c.b16 %v842, %v841
        %v854 = vpack.c.b16 %v844, %v843
        %v855 = vpack.c.b16 %v846, %v845
        %v856 = vpack.c.b16 %v848, %v847
        %865 = vmatprep.subr.bf16.mxu0 0
        %866 = vmatpush1.bf16.msra.mxu0 %v849
        %867 = vmatprep.subr.bf16.mxu0 0
        %868 = vmatpush1.bf16.msra.mxu0 %v850
        %869 = vmatprep.subr.bf16.mxu0 0
        %870 = vmatpush1.bf16.msra.mxu0 %v851
        %871 = vmatprep.subr.bf16.mxu0 0
        %872 = vmatpush1.bf16.msra.mxu0 %v852
        %873 = vmatprep.subr.bf16.mxu0 0
        %874 = vmatpush1.bf16.msra.mxu0 %v853
        %875 = vmatprep.subr.bf16.mxu0 0
        %876 = vmatpush1.bf16.msra.mxu0 %v854
        %877 = vmatprep.subr.bf16.mxu0 0
        %878 = vmatpush1.bf16.msra.mxu0 %v855
        %879 = vmatprep.subr.bf16.mxu0 0
        %880 = vmatpush1.bf16.msra.mxu0 %v856
        %881 = vmatprep.subr.bf16.mxu0 0
        %882 = vmatpush1.bf16.msra.mxu0 0
        %883 = vmatprep.subr.bf16.mxu0 0
        %884 = vmatpush1.bf16.msra.mxu0 0
        %885 = vmatprep.subr.bf16.mxu0 0
        %886 = vmatpush1.bf16.msra.mxu0 0
        %887 = vmatprep.subr.bf16.mxu0 0
        %888 = vmatpush1.bf16.msra.mxu0 0
        %889 = vmatprep.subr.bf16.mxu0 0
        %890 = vmatpush1.bf16.msra.mxu0 0
        %891 = vmatprep.subr.bf16.mxu0 0
        %892 = vmatpush1.bf16.msra.mxu0 0
        %893 = vmatprep.subr.bf16.mxu0 0
        %894 = vmatpush1.bf16.msra.mxu0 0
        %895 = vmatprep.subr.bf16.mxu0 0
        %896 = vmatpush1.bf16.msra.mxu0 0
        %897 = vmatprep.mubr.bf16.mxu0 0
        %898 = vmatmul.mubr.bf16.gmra.mrb[0].mxu0 %v799
        %v899 = vpop.f32.mrb[0].mxu0
        %v900 = vadd.f32 %v816, %v899
        %v901 = vpop.f32.mrb[0].mxu0
        %v902 = vpop.f32.mrb[0].mxu0
        %v903 = vpop.f32.mrb[0].mxu0
        %904 = vdwg.mxu0
        %vm905 = vcmask 1040384
        %v906 = vsel %vm905, %v900, -inf
        %907 = vmax.xlane.f32.xlu0 %v906
        %v908 = vpop.xlane.xlu0 %907
        %v909 = vsub.f32 %v900, %v908
        %v910 = vmul.f32 %v909, 1.442695
        %v911 = vpow.pop %v910
        %v912 = vsel %vm905, %v911, 0.0
        %913 = vadd.xlane.f32.xlu0 %v912
        %v914 = vpop.xlane.xlu0 %913
        %v915 = vlog2.pop %v914
        %v916 = vmul.f32 %v915, 0.6931472
        %v917 = vsub.f32 %v909, %v916
        %918 = vst [vmem:[%s342] sm:$0x1] %v917
        %s919 = sand.u32 %s210, 1
        %s920 = scalar_lea.sflag [#allocation4], %s919
        %s921 = sand.u32 %s210, 1
        %s922 = scalar_lea.vmem [#allocation7], %s921
        // Predicated region
        $region61: #{tpu_custom_call.1} parent=51 // pred_check
          %p923 = pneg %p220
        $region62: #{tpu_custom_call.1} parent=51 // pred_check_branch
          %925 = sbr.rel (%p923) target = $region64
        $region63: #{tpu_custom_call.1} parent=51 // pred_region
          %s927 = ssub.s32 16, 16
          %928 = vsyncadd %s920, %s927
          %s929 = smul.addr %s24, 16
          %s930 = scalar_lea.hbm %s8, %s929
          %s932 = sshll.u32 %s922, 4
          %s933 = int_to_ptr.vmem [resolvable:$true] %s932
          %935 = dma.vmem_to_hbm [thread:$0]  %s933, 16, %s930, %s920
        $region64: #{tpu_custom_call.1} parent=51 // pred_fallthru
          _
      $region52: #{tpu_custom_call.1} parent=5 // pred_fallthru
        _
      %p936 = scmp.le.s32.totalorder 2, %s19
      // Predicated region
      $region65: #{tpu_custom_call.1} parent=5 // pred_check
        %p937 = pneg %p936
      $region66: #{tpu_custom_call.1} parent=5 // pred_check_branch
        %939 = sbr.rel (%p937) target = $region68
      $region67: #{tpu_custom_call.1} parent=5 // pred_region
        %s940 = ssub.s32 %s19, 2
        // Predicated region
        $region69: #{tpu_custom_call.1} parent=67 // pred_check
          %p941 = pneg %p226
        $region70: #{tpu_custom_call.1} parent=67 // pred_check_branch
          %943 = sbr.rel (%p941) target = $region72
        $region71: #{tpu_custom_call.1} parent=67 // pred_region
          %s944 = sand.u32 %s211, 1
          %s945 = scalar_lea.sflag [#allocation4], %s944
          %s946 = sand.u32 %s211, 1
          %s947 = scalar_lea.vmem [#allocation7], %s946
          %948 = dma.done %s945, 16
        $region72: #{tpu_custom_call.1} parent=67 // pred_fallthru
          _
      $region68: #{tpu_custom_call.1} parent=5 // pred_fallthru
        _
    $region6: #{tpu_custom_call.1} parent=1 // loop_footer
      %s23 = sadd.s32 1, %s19
    $region7: #{tpu_custom_call.1} parent=1 // loop_footer_branch
      %18 = sbr.rel target = $region3
    $region8: #{tpu_custom_call.1} parent=1 // loop_exit
      _
    %949 = vsyncpa [#allocation3], 1
    %s950 = scalar_lea.sflag [#allocation3], 1
    %951 = vsyncpa %s950, 1
    %952 = vsyncpa [#allocation6], 1
    %953 = vsyncpa [#allocation4], 1
    %s954 = scalar_lea.sflag [#allocation4], 1
    %955 = vsyncpa %s954, 1

</llo_original>
